<compile_context>
chip_gen: v5e
topology: v5e:2x2
jax: 0.10.0
libtpu: 0.0.40
codegen_flags: <defaults>
</compile_context>

<pallas_src>
import jax
import jax.numpy as jnp
from jax.experimental import pallas as pl
from jax.experimental.pallas import tpu as pltpu

# Problem sizes (small, consistent with Conv2d(3, 3, 3) + LayerNorm(3)).
# The input width is chosen so the conv output width equals 3, matching
# torch.nn.LayerNorm(3) applied to the conv output's last dim.
N, C_IN, H, W = 2, 3, 8, 5
C_OUT, KH, KW = 3, 3, 3
OH, OW = H - KH + 1, W - KW + 1          # 6, 3  (OW must equal 3 for LayerNorm(3))
EPS = 1e-5

KSIZE = C_IN * KH * KW                   # 27  (matmul contraction dim)
NW = N * OH * OW                         # 36  (flattened output positions)

# Padded, tile-aligned kernel shapes.
MP = 8                                   # sublane pad of C_OUT (3 -> 8)
KP = 32                                  # contraction pad      (27 -> 32)
NP = 128                                 # lane pad of N*OH*OW  (36 -> 128)


def conv_ln_kernel(w_ref, p_ref, b_ref, g_ref, gamma_ref, beta_ref, o_ref):
    # w_ref     : (MP, KP)  conv weight, zero padded (rows = c_out)
    # p_ref     : (KP, NP)  im2col patches, zero padded (cols = n*OH*OW + oh*OW + ow)
    # b_ref     : (MP, NP)  conv bias, pre-broadcast over columns
    # g_ref     : (NP, NP)  block-diagonal group-mean matrix (1/OW within width groups)
    # gamma_ref : (MP, NP)  LayerNorm weight, tiled over width groups
    # beta_ref  : (MP, NP)  LayerNorm bias, tiled over width groups
    # o_ref     : (MP, NP)
    # --- Conv2d(3,3,3) as a single MXU matmul + bias ------------------------
    acc = jnp.dot(w_ref[...], p_ref[...], preferred_element_type=jnp.float32)
    acc = acc + b_ref[...]
    # --- LayerNorm over each width group of OW lanes (batched, one pass) ----
    mean = jnp.dot(acc, g_ref[...], preferred_element_type=jnp.float32)
    cen = acc - mean
    var = jnp.dot(cen * cen, g_ref[...], preferred_element_type=jnp.float32)
    inv = jax.lax.rsqrt(var + EPS)
    o_ref[...] = cen * inv * gamma_ref[...] + beta_ref[...]


def conv_layernorm(x, conv_w, conv_b, ln_w, ln_b):
    assert OW == 3 and ln_w.shape[-1] == OW, "LayerNorm(3) requires conv output width == 3"
    x = x.astype(jnp.float32)

    # --- im2col (layout plumbing only; the math runs in the Pallas kernel) --
    pats = [x[:, :, kh:kh + OH, kw:kw + OW]              # each (N, C_IN, OH, OW)
            for kh in range(KH) for kw in range(KW)]
    p5 = jnp.stack(pats, axis=2)                         # (N, C_IN, KH*KW, OH, OW)
    p = jnp.transpose(p5, (1, 2, 0, 3, 4)).reshape(KSIZE, NW)
    p_pad = jnp.zeros((KP, NP), jnp.float32).at[:KSIZE, :NW].set(p)

    w2 = conv_w.reshape(C_OUT, KSIZE).astype(jnp.float32)
    w_pad = jnp.zeros((MP, KP), jnp.float32).at[:C_OUT, :KSIZE].set(w2)

    b_pad = jnp.zeros((MP, NP), jnp.float32).at[:C_OUT, :].set(
        jnp.broadcast_to(conv_b.astype(jnp.float32)[:, None], (C_OUT, NP)))

    # Block-diagonal group-averaging matrix (groups of OW consecutive lanes).
    grp = jnp.arange(NP) // OW
    g_mat = jnp.where(grp[:, None] == grp[None, :], 1.0 / OW, 0.0).astype(jnp.float32)

    gamma_row = jnp.zeros((NP,), jnp.float32).at[:NW].set(
        jnp.tile(ln_w.astype(jnp.float32), N * OH))
    beta_row = jnp.zeros((NP,), jnp.float32).at[:NW].set(
        jnp.tile(ln_b.astype(jnp.float32), N * OH))
    gamma_pad = jnp.broadcast_to(gamma_row[None, :], (MP, NP))
    beta_pad = jnp.broadcast_to(beta_row[None, :], (MP, NP))

    out2d = pl.pallas_call(
        conv_ln_kernel,
        out_shape=jax.ShapeDtypeStruct((MP, NP), jnp.float32),
        in_specs=[pl.BlockSpec(memory_space=pltpu.MemorySpace.VMEM)] * 6,
        out_specs=pl.BlockSpec(memory_space=pltpu.MemorySpace.VMEM),
    )(w_pad, p_pad, b_pad, g_mat, gamma_pad, beta_pad)

    # (C_OUT, N*OH*OW) -> (N, C_OUT, OH, OW)   (free reshape/transpose in XLA)
    out = out2d[:C_OUT, :NW].reshape(C_OUT, N, OH, OW)
    return jnp.transpose(out, (1, 0, 2, 3))


def _reference(x, conv_w, conv_b, ln_w, ln_b):
    # Pure-JAX reference for a correctness check.
    out = jax.lax.conv_general_dilated(
        x, conv_w, window_strides=(1, 1), padding="VALID",
        dimension_numbers=("NCHW", "OIHW", "NCHW"))
    out = out + conv_b[None, :, None, None]
    mean = jnp.mean(out, axis=-1, keepdims=True)
    var = jnp.mean((out - mean) ** 2, axis=-1, keepdims=True)
    return (out - mean) / jnp.sqrt(var + EPS) * ln_w + ln_b


if __name__ == "__main__":
    key = jax.random.PRNGKey(0)
    kx, kw, kb, kg, kbeta = jax.random.split(key, 5)

    # Deterministic parameter init (shapes per torch.nn.Conv2d(3,3,3) + LayerNorm(3)).
    fan_in = C_IN * KH * KW
    bound = 1.0 / jnp.sqrt(fan_in)
    conv_w = jax.random.uniform(kw, (C_OUT, C_IN, KH, KW),
                                minval=-bound, maxval=bound, dtype=jnp.float32)
    conv_b = jax.random.uniform(kb, (C_OUT,),
                                minval=-bound, maxval=bound, dtype=jnp.float32)
    # Non-trivial affine params to exercise the gamma/beta path (still LayerNorm(3)).
    ln_w = 1.0 + 0.1 * jax.random.normal(kg, (OW,), dtype=jnp.float32)
    ln_b = 0.1 * jax.random.normal(kbeta, (OW,), dtype=jnp.float32)

    x = jax.random.normal(kx, (N, C_IN, H, W), dtype=jnp.float32)

    y = conv_layernorm(x, conv_w, conv_b, ln_w, ln_b)
    y = jax.block_until_ready(y)

    y_ref = _reference(x, conv_w, conv_b, ln_w, ln_b)
    assert y.shape == (N, C_OUT, OH, OW)
    assert jnp.allclose(y, y_ref, atol=1e-4, rtol=1e-4), "mismatch vs reference"

    print("KERNEL_OK")
</pallas_src>

<mosaic_0001>
module attributes {stable_mosaic.version = 11 : i64} {
  func.func @conv_ln_kernel(%arg0: memref<8x32xf32, #tpu.memory_space<vmem>>, %arg1: memref<32x128xf32, #tpu.memory_space<vmem>>, %arg2: memref<8x128xf32, #tpu.memory_space<vmem>>, %arg3: memref<128x128xf32, #tpu.memory_space<vmem>>, %arg4: memref<8x128xf32, #tpu.memory_space<vmem>>, %arg5: memref<8x128xf32, #tpu.memory_space<vmem>>, %arg6: memref<8x128xf32, #tpu.memory_space<vmem>>) attributes {dimension_semantics = [], scalar_prefetch = 0 : i64, scratch_operands = 0 : i64, tpu.core_type = #tpu.core_type<tc>} {
    %c0 = arith.constant 0 : index
    %c0_0 = arith.constant 0 : index
    %0 = vector.load %arg0[%c0, %c0_0] : memref<8x32xf32, #tpu.memory_space<vmem>>, vector<8x32xf32>
    %c0_1 = arith.constant 0 : index
    %c0_2 = arith.constant 0 : index
    %1 = vector.load %arg1[%c0_1, %c0_2] : memref<32x128xf32, #tpu.memory_space<vmem>>, vector<32x128xf32>
    %cst = arith.constant dense<0.000000e+00> : vector<8x128xf32>
    %2 = tpu.matmul %0, %1, %cst {dimension_numbers = #tpu.dot_dimension_numbers<[1], [0], [0], [1], [0, 0, 1, 1], [], []>} : vector<8x32xf32>, vector<32x128xf32>, vector<8x128xf32> -> vector<8x128xf32>
    %c0_3 = arith.constant 0 : index
    %c0_4 = arith.constant 0 : index
    %3 = vector.load %arg2[%c0_3, %c0_4] : memref<8x128xf32, #tpu.memory_space<vmem>>, vector<8x128xf32>
    %4 = arith.addf %2, %3 : vector<8x128xf32>
    %c0_5 = arith.constant 0 : index
    %c0_6 = arith.constant 0 : index
    %5 = vector.load %arg3[%c0_5, %c0_6] : memref<128x128xf32, #tpu.memory_space<vmem>>, vector<128x128xf32>
    %cst_7 = arith.constant dense<0.000000e+00> : vector<8x128xf32>
    %6 = tpu.matmul %4, %5, %cst_7 {dimension_numbers = #tpu.dot_dimension_numbers<[1], [0], [0], [1], [0, 0, 1, 1], [], []>} : vector<8x128xf32>, vector<128x128xf32>, vector<8x128xf32> -> vector<8x128xf32>
    %7 = arith.subf %4, %6 : vector<8x128xf32>
    %8 = arith.mulf %7, %7 : vector<8x128xf32>
    %c0_8 = arith.constant 0 : index
    %c0_9 = arith.constant 0 : index
    %9 = vector.load %arg3[%c0_8, %c0_9] : memref<128x128xf32, #tpu.memory_space<vmem>>, vector<128x128xf32>
    %cst_10 = arith.constant dense<0.000000e+00> : vector<8x128xf32>
    %10 = tpu.matmul %8, %9, %cst_10 {dimension_numbers = #tpu.dot_dimension_numbers<[1], [0], [0], [1], [0, 0, 1, 1], [], []>} : vector<8x128xf32>, vector<128x128xf32>, vector<8x128xf32> -> vector<8x128xf32>
    %cst_11 = arith.constant 9.99999974E-6 : f32
    %11 = vector.broadcast %cst_11 : f32 to vector<8x128xf32>
    %12 = arith.addf %10, %11 : vector<8x128xf32>
    %13 = math.rsqrt %12 : vector<8x128xf32>
    %14 = arith.mulf %7, %13 : vector<8x128xf32>
    %c0_12 = arith.constant 0 : index
    %c0_13 = arith.constant 0 : index
    %15 = vector.load %arg4[%c0_12, %c0_13] : memref<8x128xf32, #tpu.memory_space<vmem>>, vector<8x128xf32>
    %16 = arith.mulf %14, %15 : vector<8x128xf32>
    %c0_14 = arith.constant 0 : index
    %c0_15 = arith.constant 0 : index
    %17 = vector.load %arg5[%c0_14, %c0_15] : memref<8x128xf32, #tpu.memory_space<vmem>>, vector<8x128xf32>
    %18 = arith.addf %16, %17 : vector<8x128xf32>
    %c0_16 = arith.constant 0 : index
    %c0_17 = arith.constant 0 : index
    %19 = vector.load %arg6[%c0_16, %c0_17] : memref<8x128xf32, #tpu.memory_space<vmem>>, vector<8x128xf32>
    tpu.vector_store %arg6[%c0_16, %c0_17], %18 {strides = array<i32>} : memref<8x128xf32, #tpu.memory_space<vmem>>, vector<8x128xf32>,
    return
  }
}

</mosaic_0001>

<llo_original>
// kernel: tpu_custom_call.1
$region0: #{tpu_custom_call.1}
  #allocation0 [shape = 'u32[]', space=smem, size = 0x4, offset = 0x4, fixed_abs, tag = 'smem constant byte address 0x4 - core index']
  #allocation1 [shape = 'u32[72,128]{1,0:T(1,128)}', space=vmem, size = 0x9000, scoped, tag = 'internal scratch']
  %s0 = inlined_call_operand.hbm [shape: f32[8,32], index: 0, kind: input, shape index: {}]
  %s1 = inlined_call_operand.hbm [shape: f32[32,128], index: 1, kind: input, shape index: {}]
  %s2 = inlined_call_operand.hbm [shape: f32[8,128], index: 2, kind: input, shape index: {}]
  %s3 = inlined_call_operand.hbm [shape: f32[128,128], index: 3, kind: input, shape index: {}]
  %s4 = inlined_call_operand.hbm [shape: f32[8,128], index: 4, kind: input, shape index: {}]
  %s5 = inlined_call_operand.hbm [shape: f32[8,128], index: 5, kind: input, shape index: {}]
  %s6 = inlined_call_operand.hbm [shape: f32[8,128], index: 6, kind: output, shape index: {}]
  %s7 = sld [smem:[#allocation0]]
  $region58: #{tpu_custom_call.1} parent=0
    _
  %s9 = ssub.s32 1, %s7
  %s10 = scalar_select 0, %s9, %s7
  $region1: #{tpu_custom_call.1} parent=0
    #allocation2 [shape = 'u8[4096]{0}', space=vmem, size = 0x1000, scoped, tag = 'input window, operand 0, single buffered']
    #allocation3 [shape = 's32[1]{0}', space=sflag, size = 0x4, scoped, tag = 'scoped memory for tpu_custom_call.1']
    #allocation4 [shape = 's32[1]{0}', space=sflag, size = 0x4, scoped, tag = 'scoped memory for tpu_custom_call.1']
    #allocation5 [shape = 'u8[16384]{0}', space=vmem, size = 0x4000, scoped, tag = 'input window, operand 1, single buffered']
    #allocation6 [shape = 's32[1]{0}', space=sflag, size = 0x4, scoped, tag = 'scoped memory for tpu_custom_call.1']
    #allocation7 [shape = 'u8[4096]{0}', space=vmem, size = 0x1000, scoped, tag = 'input window, operand 2, single buffered']
    #allocation8 [shape = 'u8[65536]{0}', space=vmem, size = 0x10000, scoped, tag = 'input window, operand 3, single buffered']
    #allocation9 [shape = 's32[1]{0}', space=sflag, size = 0x4, scoped, tag = 'scoped memory for tpu_custom_call.1']
    #allocation10 [shape = 'u8[4096]{0}', space=vmem, size = 0x1000, scoped, tag = 'input window, operand 4, single buffered']
    #allocation11 [shape = 'u8[4096]{0}', space=vmem, size = 0x1000, scoped, tag = 'input window, operand 5, single buffered']
    #allocation12 [shape = 's32[1]{0}', space=sflag, size = 0x4, scoped, tag = 'scoped memory for tpu_custom_call.1']
    #allocation13 [shape = 'u8[4096]{0}', space=vmem, size = 0x1000, scoped, tag = 'output window, operand 0, single buffered']
    %11 = vsyncpa [#allocation3], 0
    %12 = vsyncpa [#allocation6], 0
    %13 = vsyncpa [#allocation9], 0
    %14 = vsyncpa [#allocation12], 0
    %15 = vsyncpa [#allocation4], 0
    // Predicated region
    $region2: #{tpu_custom_call.1} parent=1 // pred_check
      _
    $region3: #{tpu_custom_call.1} parent=1 // pred_check_branch
      %17 = sbr.rel (0) target = $region5
    $region4: #{tpu_custom_call.1} parent=1 // pred_region
      %19 = vsyncadd [#allocation3], 0
      %s21 = sshll.u32 %s0, 4
      %s22 = int_to_ptr.hbm [resolvable:$true] %s21
      %s23 = sshll.u32 [#allocation2], 4
      %s24 = int_to_ptr.vmem [resolvable:$true] %s23
      %26 = dma.hbm_to_vmem [thread:$0]  %s22, 128, %s24, [#allocation3]
    $region5: #{tpu_custom_call.1} parent=1 // pred_fallthru
      _
    // Predicated region
    $region6: #{tpu_custom_call.1} parent=1 // pred_check
      _
    $region7: #{tpu_custom_call.1} parent=1 // pred_check_branch
      %28 = sbr.rel (0) target = $region9
    $region8: #{tpu_custom_call.1} parent=1 // pred_region
      %30 = vsyncadd [#allocation6], 0
      %s31 = sshll.u32 %s1, 4
      %s32 = int_to_ptr.hbm [resolvable:$true] %s31
      %s33 = sshll.u32 [#allocation5], 4
      %s34 = int_to_ptr.vmem [resolvable:$true] %s33
      %39 = dma.hbm_to_vmem [thread:$0]  %s32, 512, %s34, [#allocation6], 128, 128, 8
    $region9: #{tpu_custom_call.1} parent=1 // pred_fallthru
      _
    // Predicated region
    $region10: #{tpu_custom_call.1} parent=1 // pred_check
      _
    $region11: #{tpu_custom_call.1} parent=1 // pred_check_branch
      %41 = sbr.rel (0) target = $region13
    $region12: #{tpu_custom_call.1} parent=1 // pred_region
      %43 = vsyncadd [#allocation6], 0
      %s45 = sshll.u32 %s2, 4
      %s46 = int_to_ptr.hbm [resolvable:$true] %s45
      %s47 = sshll.u32 [#allocation7], 4
      %s48 = int_to_ptr.vmem [resolvable:$true] %s47
      %50 = dma.hbm_to_vmem [thread:$0]  %s46, 128, %s48, [#allocation6]
    $region13: #{tpu_custom_call.1} parent=1 // pred_fallthru
      _
    // Predicated region
    $region14: #{tpu_custom_call.1} parent=1 // pred_check
      _
    $region15: #{tpu_custom_call.1} parent=1 // pred_check_branch
      %52 = sbr.rel (0) target = $region17
    $region16: #{tpu_custom_call.1} parent=1 // pred_region
      %54 = vsyncadd [#allocation9], 0
      %s55 = sshll.u32 %s3, 4
      %s56 = int_to_ptr.hbm [resolvable:$true] %s55
      %s57 = sshll.u32 [#allocation8], 4
      %s58 = int_to_ptr.vmem [resolvable:$true] %s57
      %63 = dma.hbm_to_vmem [thread:$0]  %s56, 2048, %s58, [#allocation9], 128, 128, 8
    $region17: #{tpu_custom_call.1} parent=1 // pred_fallthru
      _
    // Predicated region
    $region18: #{tpu_custom_call.1} parent=1 // pred_check
      _
    $region19: #{tpu_custom_call.1} parent=1 // pred_check_branch
      %65 = sbr.rel (0) target = $region21
    $region20: #{tpu_custom_call.1} parent=1 // pred_region
      %67 = vsyncadd [#allocation9], 0
      %s69 = sshll.u32 %s4, 4
      %s70 = int_to_ptr.hbm [resolvable:$true] %s69
      %s71 = sshll.u32 [#allocation10], 4
      %s72 = int_to_ptr.vmem [resolvable:$true] %s71
      %74 = dma.hbm_to_vmem [thread:$0]  %s70, 128, %s72, [#allocation9]
    $region21: #{tpu_custom_call.1} parent=1 // pred_fallthru
      _
    // Predicated region
    $region22: #{tpu_custom_call.1} parent=1 // pred_check
      _
    $region23: #{tpu_custom_call.1} parent=1 // pred_check_branch
      %76 = sbr.rel (0) target = $region25
    $region24: #{tpu_custom_call.1} parent=1 // pred_region
      %78 = vsyncadd [#allocation12], 0
      %s80 = sshll.u32 %s5, 4
      %s81 = int_to_ptr.hbm [resolvable:$true] %s80
      %s82 = sshll.u32 [#allocation11], 4
      %s83 = int_to_ptr.vmem [resolvable:$true] %s82
      %85 = dma.hbm_to_vmem [thread:$0]  %s81, 128, %s83, [#allocation12]
    $region25: #{tpu_custom_call.1} parent=1 // pred_fallthru
      _
    // Predicated region
    $region26: #{tpu_custom_call.1} parent=1 // pred_check
      _
    $region27: #{tpu_custom_call.1} parent=1 // pred_check_branch
      %87 = sbr.rel (0) target = $region29
    $region28: #{tpu_custom_call.1} parent=1 // pred_region
      %89 = dma.done [#allocation3], 128
    $region29: #{tpu_custom_call.1} parent=1 // pred_fallthru
      _
    // Predicated region
    $region30: #{tpu_custom_call.1} parent=1 // pred_check
      _
    $region31: #{tpu_custom_call.1} parent=1 // pred_check_branch
      %91 = sbr.rel (0) target = $region33
    $region32: #{tpu_custom_call.1} parent=1 // pred_region
      %93 = dma.done [#allocation6], 512
    $region33: #{tpu_custom_call.1} parent=1 // pred_fallthru
      _
    // Predicated region
    $region34: #{tpu_custom_call.1} parent=1 // pred_check
      _
    $region35: #{tpu_custom_call.1} parent=1 // pred_check_branch
      %95 = sbr.rel (0) target = $region37
    $region36: #{tpu_custom_call.1} parent=1 // pred_region
      %97 = dma.done [#allocation6], 128
    $region37: #{tpu_custom_call.1} parent=1 // pred_fallthru
      _
    // Predicated region
    $region38: #{tpu_custom_call.1} parent=1 // pred_check
      _
    $region39: #{tpu_custom_call.1} parent=1 // pred_check_branch
      %99 = sbr.rel (0) target = $region41
    $region40: #{tpu_custom_call.1} parent=1 // pred_region
      %101 = dma.done [#allocation9], 2048
    $region41: #{tpu_custom_call.1} parent=1 // pred_fallthru
      _
    // Predicated region
    $region42: #{tpu_custom_call.1} parent=1 // pred_check
      _
    $region43: #{tpu_custom_call.1} parent=1 // pred_check_branch
      %103 = sbr.rel (0) target = $region45
    $region44: #{tpu_custom_call.1} parent=1 // pred_region
      %105 = dma.done [#allocation9], 128
    $region45: #{tpu_custom_call.1} parent=1 // pred_fallthru
      _
    // Predicated region
    $region46: #{tpu_custom_call.1} parent=1 // pred_check
      _
    $region47: #{tpu_custom_call.1} parent=1 // pred_check_branch
      %107 = sbr.rel (0) target = $region49
    $region48: #{tpu_custom_call.1} parent=1 // pred_region
      %109 = dma.done [#allocation12], 128
    $region49: #{tpu_custom_call.1} parent=1 // pred_fallthru
      _
    %v110 = vld [vmem:[#allocation2] sm:$0xff]
    %v111 = vld [vmem:[#allocation5] sm:$0xff]
    %v112 = vld [vmem:[#allocation5 + $0x8] sm:$0xff]
    %v113 = vld [vmem:[#allocation5 + $0x10] sm:$0xff]
    %v114 = vld [vmem:[#allocation5 + $0x18] sm:$0xff]
    %v115 = vld [vmem:[#allocation7] sm:$0xff]
    %vm116 = vcmask 261120
    %v118 = vsel %vm116, %v110, 0
    %120 = vmatpush.msra.mxu0 0.0
    %121 = vmatpush.msra.mxu0 0.0
    %122 = vmatpush.msra.mxu0 0.0
    %123 = vmatpush.msra.mxu0 0.0
    %124 = vmatpush.msra.mxu0 0.0
    %125 = vmatpush.msra.mxu0 0.0
    %126 = vmatpush.msra.mxu0 0.0
    %127 = vmatpush.msra.mxu0 0.0
    %128 = vmatpush.msra.mxu0 0.0
    %129 = vmatpush.msra.mxu0 0.0
    %130 = vmatpush.msra.mxu0 0.0
    %131 = vmatpush.msra.mxu0 0.0
    %132 = vmatpush.msra.mxu0 %v114
    %133 = vmatpush.msra.mxu0 %v113
    %134 = vmatpush.msra.mxu0 %v112
    %135 = vmatpush.msra.mxu0 %v111
    %136 = vmatmul.f32.gmra.mxu0 %v118
    %v137 = vpop.f32.mrf.mxu0
    %v138 = vadd.f32 %v115, %v137
    %139 = vdwg.mxu0
    %v140 = vld [vmem:[#allocation8] sm:$0xff]
    %v141 = vld [vmem:[#allocation8 + $0x8] sm:$0xff]
    %v142 = vld [vmem:[#allocation8 + $0x10] sm:$0xff]
    %v143 = vld [vmem:[#allocation8 + $0x18] sm:$0xff]
    %v144 = vld [vmem:[#allocation8 + $0x20] sm:$0xff]
    %v145 = vld [vmem:[#allocation8 + $0x28] sm:$0xff]
    %v146 = vld [vmem:[#allocation8 + $0x30] sm:$0xff]
    %v147 = vld [vmem:[#allocation8 + $0x38] sm:$0xff]
    %v148 = vld [vmem:[#allocation8 + $0x40] sm:$0xff]
    %v149 = vld [vmem:[#allocation8 + $0x48] sm:$0xff]
    %v150 = vld [vmem:[#allocation8 + $0x50] sm:$0xff]
    %v151 = vld [vmem:[#allocation8 + $0x58] sm:$0xff]
    %v152 = vld [vmem:[#allocation8 + $0x60] sm:$0xff]
    %v153 = vld [vmem:[#allocation8 + $0x68] sm:$0xff]
    %v154 = vld [vmem:[#allocation8 + $0x70] sm:$0xff]
    %v155 = vld [vmem:[#allocation8 + $0x78] sm:$0xff]
    %156 = vmatpush.msra.mxu0 %v155
    %157 = vmatpush.msra.mxu0 %v154
    %158 = vmatpush.msra.mxu0 %v153
    %159 = vmatpush.msra.mxu0 %v152
    %160 = vmatpush.msra.mxu0 %v151
    %161 = vmatpush.msra.mxu0 %v150
    %162 = vmatpush.msra.mxu0 %v149
    %163 = vmatpush.msra.mxu0 %v148
    %164 = vmatpush.msra.mxu0 %v147
    %165 = vmatpush.msra.mxu0 %v146
    %166 = vmatpush.msra.mxu0 %v145
    %167 = vmatpush.msra.mxu0 %v144
    %168 = vmatpush.msra.mxu0 %v143
    %169 = vmatpush.msra.mxu0 %v142
    %170 = vmatpush.msra.mxu0 %v141
    %171 = vmatpush.msra.mxu0 %v140
    %172 = vmatmul.f32.gmra.mxu0 %v138
    %v173 = vpop.f32.mrf.mxu0
    %v174 = vadd.f32 0.0, %v173
    %175 = vdwg.mxu0
    %v176 = vsub.f32 %v138, %v174
    %v177 = vmul.f32 %v176, %v176
    %178 = vmatpush.msra.mxu0 %v155
    %179 = vmatpush.msra.mxu0 %v154
    %180 = vmatpush.msra.mxu0 %v153
    %181 = vmatpush.msra.mxu0 %v152
    %182 = vmatpush.msra.mxu0 %v151
    %183 = vmatpush.msra.mxu0 %v150
    %184 = vmatpush.msra.mxu0 %v149
    %185 = vmatpush.msra.mxu0 %v148
    %186 = vmatpush.msra.mxu0 %v147
    %187 = vmatpush.msra.mxu0 %v146
    %188 = vmatpush.msra.mxu0 %v145
    %189 = vmatpush.msra.mxu0 %v144
    %190 = vmatpush.msra.mxu0 %v143
    %191 = vmatpush.msra.mxu0 %v142
    %192 = vmatpush.msra.mxu0 %v141
    %193 = vmatpush.msra.mxu0 %v140
    %194 = vmatmul.f32.gmra.mxu0 %v177
    %v195 = vpop.f32.mrf.mxu0
    %v196 = vadd.f32 1e-05, %v195
    %197 = vdwg.mxu0
    %v198 = vrsqrt.pop %v196
    %v199 = vmul.f32 %v198, %v196
    %v200 = vmul.f32 %v199, %v198
    %v201 = vmul.f32 0.5, %v200
    %v202 = vsub.f32 1.5, %v201
    %v203 = vmul.f32 %v198, %v202
    %vm204 = vweird.f32 %v196
    %vm205 = vweird.f32 %v198
    %vm206 = vmor %vm204, %vm205
    %v207 = vsel %vm206, %v198, %v203
    %v208 = vmul.f32 %v176, %v207
    %v209 = vld [vmem:[#allocation10] sm:$0xff]
    %v210 = vmul.f32 %v208, %v209
    %v211 = vld [vmem:[#allocation11] sm:$0xff]
    %v212 = vadd.f32 %v210, %v211
    %213 = vst [vmem:[#allocation13] sm:$0xff] %v212
    // Predicated region
    $region50: #{tpu_custom_call.1} parent=1 // pred_check
      _
    $region51: #{tpu_custom_call.1} parent=1 // pred_check_branch
      %215 = sbr.rel (0) target = $region53
    $region52: #{tpu_custom_call.1} parent=1 // pred_region
      %217 = vsyncadd [#allocation4], 0
      %s219 = sshll.u32 [#allocation13], 4
      %s220 = int_to_ptr.vmem [resolvable:$true] %s219
      %s221 = sshll.u32 %s6, 4
      %s222 = int_to_ptr.hbm [resolvable:$true] %s221
      %224 = dma.vmem_to_hbm [thread:$0]  %s220, 128, %s222, [#allocation4]
    $region53: #{tpu_custom_call.1} parent=1 // pred_fallthru
      _
    // Predicated region
    $region54: #{tpu_custom_call.1} parent=1 // pred_check
      _
    $region55: #{tpu_custom_call.1} parent=1 // pred_check_branch
      %226 = sbr.rel (0) target = $region57
    $region56: #{tpu_custom_call.1} parent=1 // pred_region
      %228 = dma.done [#allocation4], 128
    $region57: #{tpu_custom_call.1} parent=1 // pred_fallthru
      _
    %229 = vsyncpa [#allocation3], 1
    %230 = vsyncpa [#allocation6], 1
    %231 = vsyncpa [#allocation9], 1
    %232 = vsyncpa [#allocation12], 1
    %233 = vsyncpa [#allocation4], 1

</llo_original>
